<compile_context>
chip_gen: v6e
topology: v6e:2x2x1
jax: 0.10.0
libtpu: 0.0.40
codegen_flags: <defaults>
</compile_context>

<pallas_src>
import functools

import jax
import jax.numpy as jnp
import numpy as np
from jax.experimental import pallas as pl
from jax.experimental.pallas import tpu as pltpu

# ---- concrete search_space (mirrors create_cnn_hp / CNN.__init__) ----------
SEARCH_SPACE = dict(
    pooling_types="max_pool",
    pooling_sizes=2,
    conv_layers=2,
    filters=4,        # init_filters
    kernels=8,        # init_kernels
    padding=0,        # init_padding
    layers=2,         # number of FC layers
    neurons=32,
    activation="relu",
)
NUM_SAMPLE_PTS = 128
CLASSES = 5
BATCH = 4
EPS = 1e-5  # nn.BatchNorm1d default eps


def _ceil_to(x, m):
    return ((x + m - 1) // m) * m


# ---- python port of create_cnn_hp + the shape bookkeeping in __init__ -------
def build_config(ss, num_sample_pts):
    conv_layers = ss["conv_layers"]
    init_filters, init_kernels, pad = ss["filters"], ss["kernels"], ss["padding"]
    pool_size = ss["pooling_sizes"]

    kernels, filters = [], []
    for i in range(conv_layers):
        if i == 0:
            filters.append(init_filters)
            kernels.append(init_kernels)
        else:
            filters.append(filters[-1] * 2)
            kernels.append(kernels[-1] // 2)

    cfg = []
    num_features = num_sample_pts
    in_ch = 1
    for i in range(conv_layers):
        k = s = kernels[i]  # __init__ uses the kernel size as the stride
        nf = (num_features + 2 * pad - (k - 1) - 1) // s + 1
        if nf <= 0:
            k = s = 1
            nf = (num_features + 2 * pad - 1) // 1 + 1
        num_features = nf
        pk = ps = pool_size
        nf = (num_features - (pk - 1) - 1) // ps + 1
        if nf <= 0:
            pk = ps = 1
            nf = num_features
        # TODO(synk): padding>0, pool sizes != 2 and non-relu / avg-pool branches
        # of the NAS search space are not implemented; the chosen search_space
        # yields pad=0, max_pool(2,2), relu, so these asserts always hold here.
        assert pad == 0 and k == s and pk == 2 and ps == 2 and num_features % 2 == 0
        num_features = nf
        cfg.append(dict(in_ch=in_ch, out_ch=filters[i], k=k, s=s,
                        pool_k=pk, pool_s=ps))
        in_ch = filters[i]
    return cfg, num_features, in_ch


# ---- the single fused Pallas kernel -----------------------------------------
def fused_cnn_kernel(x_ref, slab_ref, o_ref, *, layout, conv_meta, n_fc, inv_counts):
    """x_ref: (B, Cin*L) activations, slab_ref: packed parameter slab,
    o_ref: (B, classes) logits.  layout/conv_meta/inv_counts are static."""
    f32 = jnp.float32

    def get(name):
        r0, h, w = layout[name]           # static offsets -> static slices
        return slab_ref[r0:r0 + h, :w]

    x = x_ref[...].astype(f32)            # (B, Cin*L), channel-major lanes

    for i, m in enumerate(conv_meta):
        cw, half, Lp = m["cw"], m["half"], m["Lp"]
        # Conv1d (stride == kernel) for even & odd pooled positions: ONE matmul
        # against the column-packed [we | wo] weight (each half 128-lane padded).
        z = jnp.dot(x, get(f"conv{i}_w"), preferred_element_type=f32)   # (B, 2*half)
        ze = z[:, :cw]
        zo = z[:, half:half + cw]
        # relu(maxpool(conv + b)) == relu(max(ze, zo) + b): single bias add.
        p = jnp.maximum(jnp.maximum(ze, zo) + get(f"conv{i}_b"), 0.0)   # (B, cw)

        # BatchNorm1d, training mode (biased stats over batch x spatial).
        # Channels occupy contiguous lane blocks of width Lp; per-channel
        # reduce / broadcast are two stacked grouping matmuls.
        sums = jnp.concatenate(
            [jnp.sum(p, axis=0, keepdims=True),
             jnp.sum(p * p, axis=0, keepdims=True)], axis=0)            # (2, cw)
        if Lp > 1:
            mom = jnp.dot(sums, get(f"bn{i}_G"),
                          preferred_element_type=f32) * inv_counts[i]   # (2, Cout)
        else:
            mom = sums * inv_counts[i]                                   # cw == Cout
        mean_c = mom[0:1]
        var_c = mom[1:2] - mean_c * mean_c
        gb = get(f"bn{i}_gb")                                            # (2, Cout): gamma; beta
        scale_c = gb[0:1] * jax.lax.rsqrt(var_c + EPS)
        shift_c = gb[1:2] - mean_c * scale_c
        if Lp > 1:
            ssb = jnp.dot(jnp.concatenate([scale_c, shift_c], axis=0),
                          get(f"bn{i}_GT"), preferred_element_type=f32)  # (2, cw)
            scale_b, shift_b = ssb[0:1], ssb[1:2]
        else:
            scale_b, shift_b = scale_c, shift_c
        # channel-major lane layout == torch nn.Flatten order -> flatten is a no-op
        x = p * scale_b + shift_b

    for j in range(n_fc):
        x = jnp.maximum(
            jnp.dot(x, get(f"fc{j}_w"), preferred_element_type=f32)
            + get(f"fc{j}_b"), 0.0)

    # Only HBM store of the whole kernel: the (B, classes) logits.
    o_ref[...] = (jnp.dot(x, get("out_w"), preferred_element_type=f32)
                  + get("out_b")).astype(o_ref.dtype)


def cnn_forward_fused(x_ncl, slab, layout, conv_meta, inv_counts, n_fc, classes):
    B = x_ncl.shape[0]
    # NCL -> (B, Cin*L): row-major flatten, free (no data movement).
    x2d = x_ncl.reshape(B, -1)
    kern = functools.partial(fused_cnn_kernel, layout=layout, conv_meta=conv_meta,
                             n_fc=n_fc, inv_counts=inv_counts)
    vmem = pl.BlockSpec(memory_space=pltpu.MemorySpace.VMEM)
    return pl.pallas_call(
        kern,
        out_shape=jax.ShapeDtypeStruct((B, classes), jnp.float32),
        in_specs=[vmem, vmem],     # 2 inputs total: activations + parameter slab
        out_specs=vmem,
    )(x2d, slab)


# ---- host-side one-time parameter packing into ONE tile-aligned slab --------
def pack_params(params, cfg, batch, ss, num_sample_pts):
    entries = []        # (name, 2-D np.float32 array) in kernel consumption order
    conv_meta = []
    inv_counts = []
    L = num_sample_pts
    for i, layer in enumerate(cfg):
        Cin, Cout, K, S = layer["in_ch"], layer["out_ch"], layer["k"], layer["s"]
        Lout = (L - K) // S + 1
        # TODO(synk): odd Lout / Lout==1 branches of the NAS space would need a
        # non even/odd conv path; not reachable with the chosen search_space.
        assert Lout >= 2 and Lout % 2 == 0, "even/odd conv fusion needs even Lout>=2"
        Lp = Lout // 2
        cw = Cout * Lp
        half = _ceil_to(cw, 128)      # 128-lane pad each half so the split is vreg-aligned
        w = np.asarray(params[f"conv{i}_w"], np.float32)   # (Cout, Cin, K) torch layout
        b = np.asarray(params[f"conv{i}_b"], np.float32)   # (Cout,)
        Wf = np.zeros((Cin * L, 2 * half), np.float32)     # [we | wo]
        for o in range(Cout):
            for c in range(Cin):
                for p in range(Lp):
                    col = o * Lp + p
                    r_even = c * L + (2 * p) * S
                    r_odd = c * L + (2 * p + 1) * S
                    Wf[r_even:r_even + K, col] = w[o, c, :]
                    Wf[r_odd:r_odd + K, half + col] = w[o, c, :]
        entries.append((f"conv{i}_w", Wf))
        entries.append((f"conv{i}_b", np.repeat(b, Lp)[None, :]))          # (1, cw)
        if Lp > 1:
            G = np.kron(np.eye(Cout, dtype=np.float32),
                        np.ones((Lp, 1), np.float32))                      # (cw, Cout)
            entries.append((f"bn{i}_G", G))
            entries.append((f"bn{i}_GT", np.ascontiguousarray(G.T)))       # (Cout, cw)
        gb = np.stack([np.asarray(params[f"bn{i}_g"], np.float32),
                       np.asarray(params[f"bn{i}_b"], np.float32)], axis=0)  # (2, Cout)
        entries.append((f"bn{i}_gb", gb))
        conv_meta.append(dict(cw=cw, half=half, Lp=Lp))
        inv_counts.append(1.0 / float(batch * Lp))
        L = Lp
    for j in range(ss["layers"]):
        entries.append((f"fc{j}_w", np.asarray(params[f"fc{j}_w"], np.float32)))
        entries.append((f"fc{j}_b", np.asarray(params[f"fc{j}_b"], np.float32)[None, :]))
    entries.append(("out_w", np.asarray(params["out_w"], np.float32)))
    entries.append(("out_b", np.asarray(params["out_b"], np.float32)[None, :]))

    # Concatenate everything into one (rows, slab_w) slab; each block starts at
    # a row multiple of 8 and column 0, zero-padded to the slab width.
    slab_w = _ceil_to(max(a.shape[1] for _, a in entries), 128)
    layout = {}
    blocks = []
    row = 0
    for name, a in entries:
        h = _ceil_to(a.shape[0], 8)
        blk = np.zeros((h, slab_w), np.float32)
        blk[:a.shape[0], :a.shape[1]] = a
        layout[name] = (row, a.shape[0], a.shape[1])
        blocks.append(blk)
        row += h
    slab = jnp.asarray(np.concatenate(blocks, axis=0))
    return slab, layout, tuple(conv_meta), tuple(inv_counts)


# ---- pure-JAX reference (for correctness check only) -------------------------
def cnn_forward_ref(x_ncl, params, cfg, ss):
    x = x_ncl
    for i, layer in enumerate(cfg):
        Cin, Cout, K, S = layer["in_ch"], layer["out_ch"], layer["k"], layer["s"]
        B, _, L = x.shape
        Lout = (L - K) // S + 1
        w = params[f"conv{i}_w"]                              # (Cout, Cin, K)
        patches = x[:, :, :Lout * K].reshape(B, Cin, Lout, K)  # valid: S == K
        y = jnp.einsum("bclk,ock->bol", patches, w) \
            + params[f"conv{i}_b"][None, :, None]
        y = jnp.maximum(y, 0.0)
        Lp = y.shape[2] // 2
        y = jnp.max(y[:, :, :Lp * 2].reshape(B, Cout, Lp, 2), axis=-1)
        mean = jnp.mean(y, axis=(0, 2), keepdims=True)
        var = jnp.mean((y - mean) ** 2, axis=(0, 2), keepdims=True)
        y = (y - mean) / jnp.sqrt(var + EPS)
        y = y * params[f"bn{i}_g"][None, :, None] + params[f"bn{i}_b"][None, :, None]
        x = y
    x = x.reshape(x.shape[0], -1)
    for j in range(ss["layers"]):
        x = jnp.maximum(x @ params[f"fc{j}_w"] + params[f"fc{j}_b"], 0.0)
    return x @ params["out_w"] + params["out_b"]


# ---- deterministic parameter init (torch-like layouts) -----------------------
def init_params(key, cfg, flatten_dim, neurons, classes, num_fc_layers):
    params = {}

    def nxt():
        nonlocal key
        key, sub = jax.random.split(key)
        return sub

    for i, layer in enumerate(cfg):
        Cout, Cin, K = layer["out_ch"], layer["in_ch"], layer["k"]
        params[f"conv{i}_w"] = 0.1 * jax.random.normal(nxt(), (Cout, Cin, K), jnp.float32)
        params[f"conv{i}_b"] = 0.1 * jax.random.normal(nxt(), (Cout,), jnp.float32)
        params[f"bn{i}_g"] = jnp.ones((Cout,), jnp.float32)    # BN default weight
        params[f"bn{i}_b"] = jnp.zeros((Cout,), jnp.float32)   # BN default bias
    in_dim = flatten_dim
    for j in range(num_fc_layers):
        params[f"fc{j}_w"] = 0.1 * jax.random.normal(nxt(), (in_dim, neurons), jnp.float32)
        params[f"fc{j}_b"] = 0.1 * jax.random.normal(nxt(), (neurons,), jnp.float32)
        in_dim = neurons
    params["out_w"] = 0.1 * jax.random.normal(nxt(), (in_dim, classes), jnp.float32)
    params["out_b"] = 0.1 * jax.random.normal(nxt(), (classes,), jnp.float32)
    return params


if __name__ == "__main__":
    cfg, num_features, last_ch = build_config(SEARCH_SPACE, NUM_SAMPLE_PTS)
    flatten_dim = last_ch * num_features  # prev_out_channels * num_features

    key = jax.random.PRNGKey(0)
    key, xk = jax.random.split(key)
    # Conv1d(in_channels=1, ...) => input is (B, 1, num_sample_pts), NCL.
    x = jax.random.normal(xk, (BATCH, 1, NUM_SAMPLE_PTS), jnp.float32)
    params = init_params(key, cfg, flatten_dim, SEARCH_SPACE["neurons"],
                         CLASSES, SEARCH_SPACE["layers"])

    # One-time host-side packing of ALL parameters into one tile-aligned slab.
    slab, layout, conv_meta, inv_counts = pack_params(
        params, cfg, BATCH, SEARCH_SPACE, NUM_SAMPLE_PTS)

    out = cnn_forward_fused(x, slab, layout, conv_meta, inv_counts,
                            n_fc=SEARCH_SPACE["layers"], classes=CLASSES)
    out = jax.block_until_ready(out)
    assert out.shape == (BATCH, CLASSES)

    ref = cnn_forward_ref(x, params, cfg, SEARCH_SPACE)
    np.testing.assert_allclose(np.asarray(out), np.asarray(ref),
                               atol=1e-4, rtol=1e-4)
    print("KERNEL_OK")
</pallas_src>

<mosaic_0001>
module attributes {stable_mosaic.version = 11 : i64} {
  func.func @fused_cnn_kernel(%arg0: memref<4x128xf32, #tpu.memory_space<vmem>>, %arg1: memref<328x256xf32, #tpu.memory_space<vmem>>, %arg2: memref<4x5xf32, #tpu.memory_space<vmem>>) attributes {dimension_semantics = [], scalar_prefetch = 0 : i64, scratch_operands = 0 : i64, tpu.core_type = #tpu.core_type<tc>} {
    %c0 = arith.constant 0 : index
    %c0_0 = arith.constant 0 : index
    %0 = vector.load %arg0[%c0, %c0_0] : memref<4x128xf32, #tpu.memory_space<vmem>>, vector<4x128xf32>
    %c0_1 = arith.constant 0 : index
    %c0_2 = arith.constant 0 : index
    %1 = vector.load %arg1[%c0_1, %c0_2] : memref<328x256xf32, #tpu.memory_space<vmem>>, vector<128x256xf32>
    %cst = arith.constant dense<0.000000e+00> : vector<4x256xf32>
    %2 = tpu.matmul %0, %1, %cst {dimension_numbers = #tpu.dot_dimension_numbers<[1], [0], [0], [1], [0, 0, 1, 1], [], []>} : vector<4x128xf32>, vector<128x256xf32>, vector<4x256xf32> -> vector<4x256xf32>
    %3 = vector.extract_strided_slice %2 {offsets = [0, 0], sizes = [4, 32], strides = [1, 1]} : vector<4x256xf32> to vector<4x32xf32>
    %4 = vector.extract_strided_slice %2 {offsets = [0, 128], sizes = [4, 32], strides = [1, 1]} : vector<4x256xf32> to vector<4x32xf32>
    %5 = arith.maximumf %3, %4 : vector<4x32xf32>
    %c128 = arith.constant 128 : index
    %c0_3 = arith.constant 0 : index
    %6 = vector.load %arg1[%c128, %c0_3] : memref<328x256xf32, #tpu.memory_space<vmem>>, vector<1x32xf32>
    %7 = vector.broadcast %6 : vector<1x32xf32> to vector<4x32xf32>
    %8 = arith.addf %5, %7 : vector<4x32xf32>
    %cst_4 = arith.constant 0.000000e+00 : f32
    %9 = vector.broadcast %cst_4 : f32 to vector<4x32xf32>
    %10 = arith.maximumf %8, %9 : vector<4x32xf32>
    %cst_5 = arith.constant dense<0.000000e+00> : vector<32xf32>
    %11 = vector.multi_reduction <add>, %10, %cst_5 [0] : vector<4x32xf32> to vector<32xf32>
    %12 = vector.shape_cast %11 : vector<32xf32> to vector<1x32xf32>
    %13 = arith.mulf %10, %10 : vector<4x32xf32>
    %cst_6 = arith.constant dense<0.000000e+00> : vector<32xf32>
    %14 = vector.multi_reduction <add>, %13, %cst_6 [0] : vector<4x32xf32> to vector<32xf32>
    %15 = vector.shape_cast %14 : vector<32xf32> to vector<1x32xf32>
    %16 = tpu.concatenate %12, %15 in 0 : vector<1x32xf32>, vector<1x32xf32> -> vector<2x32xf32>
    %c136 = arith.constant 136 : index
    %c0_7 = arith.constant 0 : index
    %17 = vector.load %arg1[%c136, %c0_7] : memref<328x256xf32, #tpu.memory_space<vmem>>, vector<32x4xf32>
    %cst_8 = arith.constant dense<0.000000e+00> : vector<2x4xf32>
    %18 = tpu.matmul %16, %17, %cst_8 {dimension_numbers = #tpu.dot_dimension_numbers<[1], [0], [0], [1], [0, 0, 1, 1], [], []>} : vector<2x32xf32>, vector<32x4xf32>, vector<2x4xf32> -> vector<2x4xf32>
    %cst_9 = arith.constant 3.125000e-02 : f32
    %19 = vector.broadcast %cst_9 : f32 to vector<2x4xf32>
    %20 = arith.mulf %18, %19 : vector<2x4xf32>
    %21 = vector.extract_strided_slice %20 {offsets = [0, 0], sizes = [1, 4], strides = [1, 1]} : vector<2x4xf32> to vector<1x4xf32>
    %22 = vector.extract_strided_slice %20 {offsets = [1, 0], sizes = [1, 4], strides = [1, 1]} : vector<2x4xf32> to vector<1x4xf32>
    %23 = arith.mulf %21, %21 : vector<1x4xf32>
    %24 = arith.subf %22, %23 : vector<1x4xf32>
    %c176 = arith.constant 176 : index
    %c0_10 = arith.constant 0 : index
    %25 = vector.load %arg1[%c176, %c0_10] : memref<328x256xf32, #tpu.memory_space<vmem>>, vector<2x4xf32>
    %26 = vector.extract_strided_slice %25 {offsets = [0, 0], sizes = [1, 4], strides = [1, 1]} : vector<2x4xf32> to vector<1x4xf32>
    %cst_11 = arith.constant 9.99999974E-6 : f32
    %27 = vector.broadcast %cst_11 : f32 to vector<1x4xf32>
    %28 = arith.addf %24, %27 : vector<1x4xf32>
    %29 = math.rsqrt %28 : vector<1x4xf32>
    %30 = arith.mulf %26, %29 : vector<1x4xf32>
    %31 = vector.extract_strided_slice %25 {offsets = [1, 0], sizes = [1, 4], strides = [1, 1]} : vector<2x4xf32> to vector<1x4xf32>
    %32 = arith.mulf %21, %30 : vector<1x4xf32>
    %33 = arith.subf %31, %32 : vector<1x4xf32>
    %34 = tpu.concatenate %30, %33 in 0 : vector<1x4xf32>, vector<1x4xf32> -> vector<2x4xf32>
    %c168 = arith.constant 168 : index
    %c0_12 = arith.constant 0 : index
    %35 = vector.load %arg1[%c168, %c0_12] : memref<328x256xf32, #tpu.memory_space<vmem>>, vector<4x32xf32>
    %cst_13 = arith.constant dense<0.000000e+00> : vector<2x32xf32>
    %36 = tpu.matmul %34, %35, %cst_13 {dimension_numbers = #tpu.dot_dimension_numbers<[1], [0], [0], [1], [0, 0, 1, 1], [], []>} : vector<2x4xf32>, vector<4x32xf32>, vector<2x32xf32> -> vector<2x32xf32>
    %37 = vector.extract_strided_slice %36 {offsets = [0, 0], sizes = [1, 32], strides = [1, 1]} : vector<2x32xf32> to vector<1x32xf32>
    %38 = vector.extract_strided_slice %36 {offsets = [1, 0], sizes = [1, 32], strides = [1, 1]} : vector<2x32xf32> to vector<1x32xf32>
    %39 = vector.broadcast %37 : vector<1x32xf32> to vector<4x32xf32>
    %40 = arith.mulf %10, %39 : vector<4x32xf32>
    %41 = vector.broadcast %38 : vector<1x32xf32> to vector<4x32xf32>
    %42 = arith.addf %40, %41 : vector<4x32xf32>
    %c184 = arith.constant 184 : index
    %c0_14 = arith.constant 0 : index
    %43 = vector.load %arg1[%c184, %c0_14] : memref<328x256xf32, #tpu.memory_space<vmem>>, vector<32x256xf32>
    %cst_15 = arith.constant dense<0.000000e+00> : vector<4x256xf32>
    %44 = tpu.matmul %42, %43, %cst_15 {dimension_numbers = #tpu.dot_dimension_numbers<[1], [0], [0], [1], [0, 0, 1, 1], [], []>} : vector<4x32xf32>, vector<32x256xf32>, vector<4x256xf32> -> vector<4x256xf32>
    %45 = vector.extract_strided_slice %44 {offsets = [0, 0], sizes = [4, 8], strides = [1, 1]} : vector<4x256xf32> to vector<4x8xf32>
    %46 = vector.extract_strided_slice %44 {offsets = [0, 128], sizes = [4, 8], strides = [1, 1]} : vector<4x256xf32> to vector<4x8xf32>
    %47 = arith.maximumf %45, %46 : vector<4x8xf32>
    %c216 = arith.constant 216 : index
    %c0_16 = arith.constant 0 : index
    %48 = vector.load %arg1[%c216, %c0_16] : memref<328x256xf32, #tpu.memory_space<vmem>>, vector<1x8xf32>
    %49 = vector.broadcast %48 : vector<1x8xf32> to vector<4x8xf32>
    %50 = arith.addf %47, %49 : vector<4x8xf32>
    %cst_17 = arith.constant 0.000000e+00 : f32
    %51 = vector.broadcast %cst_17 : f32 to vector<4x8xf32>
    %52 = arith.maximumf %50, %51 : vector<4x8xf32>
    %cst_18 = arith.constant dense<0.000000e+00> : vector<8xf32>
    %53 = vector.multi_reduction <add>, %52, %cst_18 [0] : vector<4x8xf32> to vector<8xf32>
    %54 = vector.shape_cast %53 : vector<8xf32> to vector<1x8xf32>
    %55 = arith.mulf %52, %52 : vector<4x8xf32>
    %cst_19 = arith.constant dense<0.000000e+00> : vector<8xf32>
    %56 = vector.multi_reduction <add>, %55, %cst_19 [0] : vector<4x8xf32> to vector<8xf32>
    %57 = vector.shape_cast %56 : vector<8xf32> to vector<1x8xf32>
    %58 = tpu.concatenate %54, %57 in 0 : vector<1x8xf32>, vector<1x8xf32> -> vector<2x8xf32>
    %cst_20 = arith.constant 2.500000e-01 : f32
    %59 = vector.broadcast %cst_20 : f32 to vector<2x8xf32>
    %60 = arith.mulf %58, %59 : vector<2x8xf32>
    %61 = vector.extract_strided_slice %60 {offsets = [0, 0], sizes = [1, 8], strides = [1, 1]} : vector<2x8xf32> to vector<1x8xf32>
    %62 = vector.extract_strided_slice %60 {offsets = [1, 0], sizes = [1, 8], strides = [1, 1]} : vector<2x8xf32> to vector<1x8xf32>
    %63 = arith.mulf %61, %61 : vector<1x8xf32>
    %64 = arith.subf %62, %63 : vector<1x8xf32>
    %c224 = arith.constant 224 : index
    %c0_21 = arith.constant 0 : index
    %65 = vector.load %arg1[%c224, %c0_21] : memref<328x256xf32, #tpu.memory_space<vmem>>, vector<2x8xf32>
    %66 = vector.extract_strided_slice %65 {offsets = [0, 0], sizes = [1, 8], strides = [1, 1]} : vector<2x8xf32> to vector<1x8xf32>
    %cst_22 = arith.constant 9.99999974E-6 : f32
    %67 = vector.broadcast %cst_22 : f32 to vector<1x8xf32>
    %68 = arith.addf %64, %67 : vector<1x8xf32>
    %69 = math.rsqrt %68 : vector<1x8xf32>
    %70 = arith.mulf %66, %69 : vector<1x8xf32>
    %71 = vector.extract_strided_slice %65 {offsets = [1, 0], sizes = [1, 8], strides = [1, 1]} : vector<2x8xf32> to vector<1x8xf32>
    %72 = arith.mulf %61, %70 : vector<1x8xf32>
    %73 = arith.subf %71, %72 : vector<1x8xf32>
    %74 = vector.broadcast %70 : vector<1x8xf32> to vector<4x8xf32>
    %75 = arith.mulf %52, %74 : vector<4x8xf32>
    %76 = vector.broadcast %73 : vector<1x8xf32> to vector<4x8xf32>
    %77 = arith.addf %75, %76 : vector<4x8xf32>
    %c232 = arith.constant 232 : index
    %c0_23 = arith.constant 0 : index
    %78 = vector.load %arg1[%c232, %c0_23] : memref<328x256xf32, #tpu.memory_space<vmem>>, vector<8x32xf32>
    %cst_24 = arith.constant dense<0.000000e+00> : vector<4x32xf32>
    %79 = tpu.matmul %77, %78, %cst_24 {dimension_numbers = #tpu.dot_dimension_numbers<[1], [0], [0], [1], [0, 0, 1, 1], [], []>} : vector<4x8xf32>, vector<8x32xf32>, vector<4x32xf32> -> vector<4x32xf32>
    %c240 = arith.constant 240 : index
    %c0_25 = arith.constant 0 : index
    %80 = vector.load %arg1[%c240, %c0_25] : memref<328x256xf32, #tpu.memory_space<vmem>>, vector<1x32xf32>
    %81 = vector.broadcast %80 : vector<1x32xf32> to vector<4x32xf32>
    %82 = arith.addf %79, %81 : vector<4x32xf32>
    %cst_26 = arith.constant 0.000000e+00 : f32
    %83 = vector.broadcast %cst_26 : f32 to vector<4x32xf32>
    %84 = arith.maximumf %82, %83 : vector<4x32xf32>
    %c248 = arith.constant 248 : index
    %c0_27 = arith.constant 0 : index
    %85 = vector.load %arg1[%c248, %c0_27] : memref<328x256xf32, #tpu.memory_space<vmem>>, vector<32x32xf32>
    %cst_28 = arith.constant dense<0.000000e+00> : vector<4x32xf32>
    %86 = tpu.matmul %84, %85, %cst_28 {dimension_numbers = #tpu.dot_dimension_numbers<[1], [0], [0], [1], [0, 0, 1, 1], [], []>} : vector<4x32xf32>, vector<32x32xf32>, vector<4x32xf32> -> vector<4x32xf32>
    %c280 = arith.constant 280 : index
    %c0_29 = arith.constant 0 : index
    %87 = vector.load %arg1[%c280, %c0_29] : memref<328x256xf32, #tpu.memory_space<vmem>>, vector<1x32xf32>
    %88 = vector.broadcast %87 : vector<1x32xf32> to vector<4x32xf32>
    %89 = arith.addf %86, %88 : vector<4x32xf32>
    %cst_30 = arith.constant 0.000000e+00 : f32
    %90 = vector.broadcast %cst_30 : f32 to vector<4x32xf32>
    %91 = arith.maximumf %89, %90 : vector<4x32xf32>
    %c288 = arith.constant 288 : index
    %c0_31 = arith.constant 0 : index
    %92 = vector.load %arg1[%c288, %c0_31] : memref<328x256xf32, #tpu.memory_space<vmem>>, vector<32x5xf32>
    %cst_32 = arith.constant dense<0.000000e+00> : vector<4x5xf32>
    %93 = tpu.matmul %91, %92, %cst_32 {dimension_numbers = #tpu.dot_dimension_numbers<[1], [0], [0], [1], [0, 0, 1, 1], [], []>} : vector<4x32xf32>, vector<32x5xf32>, vector<4x5xf32> -> vector<4x5xf32>
    %c320 = arith.constant 320 : index
    %c0_33 = arith.constant 0 : index
    %94 = vector.load %arg1[%c320, %c0_33] : memref<328x256xf32, #tpu.memory_space<vmem>>, vector<1x5xf32>
    %95 = vector.broadcast %94 : vector<1x5xf32> to vector<4x5xf32>
    %96 = arith.addf %93, %95 : vector<4x5xf32>
    %c0_34 = arith.constant 0 : index
    %c0_35 = arith.constant 0 : index
    %97 = vector.load %arg2[%c0_34, %c0_35] : memref<4x5xf32, #tpu.memory_space<vmem>>, vector<4x5xf32>
    tpu.vector_store %arg2[%c0_34, %c0_35], %96 {strides = array<i32>} : memref<4x5xf32, #tpu.memory_space<vmem>>, vector<4x5xf32>,
    return
  }
}

</mosaic_0001>

<llo_original>
// kernel: tpu_custom_call.1
$region0: #{tpu_custom_call.1}
  #allocation0 [shape = 'u32[]', space=smem, size = 0x4, offset = 0x4, fixed_abs, tag = 'smem constant byte address 0x4 - core index']
  #allocation1 [shape = 'u32[144,128]{1,0:T(1,128)}', space=vmem, size = 0x12000, scoped, tag = 'internal scratch']
  %s0 = inlined_call_operand.hbm [shape: f32[4,128], index: 0, kind: input, shape index: {}]
  %s1 = inlined_call_operand.hbm [shape: f32[328,256], index: 1, kind: input, shape index: {}]
  %s2 = inlined_call_operand.hbm [shape: f32[4,5], index: 2, kind: output, shape index: {}]
  %s3 = sld [smem:[#allocation0]]
  $region26: #{tpu_custom_call.1} parent=0
    _
  %s5 = ssub.s32 1, %s3
  %s6 = scalar_select 0, %s5, %s3
  $region1: #{tpu_custom_call.1} parent=0
    #allocation2 [shape = 'u8[2048]{0}', space=vmem, size = 0x800, scoped, tag = 'input window, operand 0, single buffered']
    #allocation3 [shape = 's32[1]{0}', space=sflag, size = 0x4, scoped, tag = 'scoped memory for tpu_custom_call.1']
    #allocation4 [shape = 's32[1]{0}', space=sflag, size = 0x4, scoped, tag = 'scoped memory for tpu_custom_call.1']
    #allocation5 [shape = 'u8[335872]{0}', space=vmem, size = 0x52000, scoped, tag = 'input window, operand 1, single buffered']
    #allocation6 [shape = 's32[1]{0}', space=sflag, size = 0x4, scoped, tag = 'scoped memory for tpu_custom_call.1']
    #allocation7 [shape = 'u8[2048]{0}', space=vmem, size = 0x800, scoped, tag = 'output window, operand 0, single buffered']
    %7 = vsyncpa [#allocation3], 0
    %8 = vsyncpa [#allocation6], 0
    %9 = vsyncpa [#allocation4], 0
    // Predicated region
    $region2: #{tpu_custom_call.1} parent=1 // pred_check
      _
    $region3: #{tpu_custom_call.1} parent=1 // pred_check_branch
      %11 = sbr.rel (0) target = $region5
    $region4: #{tpu_custom_call.1} parent=1 // pred_region
      %s13 = ssub.s32 64, 64
      %14 = vsyncadd [#allocation3], %s13
      %s16 = sshll.u32 [#allocation2], 4
      %s17 = int_to_ptr.vmem [resolvable:$true] %s16
      %19 = dma.hbm_to_vmem [thread:$0]  %s0, 64, %s17, [#allocation3]
    $region5: #{tpu_custom_call.1} parent=1 // pred_fallthru
      _
    // Predicated region
    $region6: #{tpu_custom_call.1} parent=1 // pred_check
      _
    $region7: #{tpu_custom_call.1} parent=1 // pred_check_branch
      %21 = sbr.rel (0) target = $region9
    $region8: #{tpu_custom_call.1} parent=1 // pred_region
      %s23 = ssub.s32 10496, 10496
      %24 = vsyncadd [#allocation6], %s23
      %s25 = sshll.u32 [#allocation5], 4
      %s26 = int_to_ptr.vmem [resolvable:$true] %s25
      %31 = dma.hbm_to_vmem [thread:$0]  %s1, 10496, %s26, [#allocation6], 256, 256, 16
    $region9: #{tpu_custom_call.1} parent=1 // pred_fallthru
      _
    // Predicated region
    $region10: #{tpu_custom_call.1} parent=1 // pred_check
      _
    $region11: #{tpu_custom_call.1} parent=1 // pred_check_branch
      %33 = sbr.rel (0) target = $region13
    $region12: #{tpu_custom_call.1} parent=1 // pred_region
      %34 = dma.done [#allocation3], 64
    $region13: #{tpu_custom_call.1} parent=1 // pred_fallthru
      _
    // Predicated region
    $region14: #{tpu_custom_call.1} parent=1 // pred_check
      _
    $region15: #{tpu_custom_call.1} parent=1 // pred_check_branch
      %36 = sbr.rel (0) target = $region17
    $region16: #{tpu_custom_call.1} parent=1 // pred_region
      %37 = dma.done [#allocation6], 10496
    $region17: #{tpu_custom_call.1} parent=1 // pred_fallthru
      _
    %v38 = vld [vmem:[#allocation2] sm:$0xf]
    %v39 = vld [vmem:[#allocation5] sm:$0xff]
    %v40 = vld [vmem:[#allocation5 + $0x8] sm:$0xff]
    %v41 = vld [vmem:[#allocation5 + $0x10] sm:$0xff]
    %v42 = vld [vmem:[#allocation5 + $0x18] sm:$0xff]
    %v43 = vld [vmem:[#allocation5 + $0x20] sm:$0xff]
    %v44 = vld [vmem:[#allocation5 + $0x28] sm:$0xff]
    %v45 = vld [vmem:[#allocation5 + $0x30] sm:$0xff]
    %v46 = vld [vmem:[#allocation5 + $0x38] sm:$0xff]
    %v47 = vld [vmem:[#allocation5 + $0x40] sm:$0xff]
    %v48 = vld [vmem:[#allocation5 + $0x48] sm:$0xff]
    %v49 = vld [vmem:[#allocation5 + $0x50] sm:$0xff]
    %v50 = vld [vmem:[#allocation5 + $0x58] sm:$0xff]
    %v51 = vld [vmem:[#allocation5 + $0x60] sm:$0xff]
    %v52 = vld [vmem:[#allocation5 + $0x68] sm:$0xff]
    %v53 = vld [vmem:[#allocation5 + $0x70] sm:$0xff]
    %v54 = vld [vmem:[#allocation5 + $0x78] sm:$0xff]
    %v55 = vld [vmem:[#allocation5 + $0x80] sm:$0xff]
    %v56 = vld [vmem:[#allocation5 + $0x88] sm:$0xff]
    %v57 = vld [vmem:[#allocation5 + $0x90] sm:$0xff]
    %v58 = vld [vmem:[#allocation5 + $0x98] sm:$0xff]
    %v59 = vld [vmem:[#allocation5 + $0xa0] sm:$0xff]
    %v60 = vld [vmem:[#allocation5 + $0xa8] sm:$0xff]
    %v61 = vld [vmem:[#allocation5 + $0xb0] sm:$0xff]
    %v62 = vld [vmem:[#allocation5 + $0xb8] sm:$0xff]
    %v63 = vld [vmem:[#allocation5 + $0xc0] sm:$0xff]
    %v64 = vld [vmem:[#allocation5 + $0xc8] sm:$0xff]
    %v65 = vld [vmem:[#allocation5 + $0xd0] sm:$0xff]
    %v66 = vld [vmem:[#allocation5 + $0xd8] sm:$0xff]
    %v67 = vld [vmem:[#allocation5 + $0xe0] sm:$0xff]
    %v68 = vld [vmem:[#allocation5 + $0xe8] sm:$0xff]
    %v69 = vld [vmem:[#allocation5 + $0xf0] sm:$0xff]
    %v70 = vld [vmem:[#allocation5 + $0xf8] sm:$0xff]
    %71 = vmatprep.subr.mxu0 %v70
    %72 = vmatpush1.msra.mxu0 %v69
    %73 = vmatprep.subr.mxu0 %v68
    %74 = vmatpush1.msra.mxu0 %v67
    %75 = vmatprep.subr.mxu0 %v66
    %76 = vmatpush1.msra.mxu0 %v65
    %77 = vmatprep.subr.mxu0 %v64
    %78 = vmatpush1.msra.mxu0 %v63
    %79 = vmatprep.subr.mxu0 %v62
    %80 = vmatpush1.msra.mxu0 %v61
    %81 = vmatprep.subr.mxu0 %v60
    %82 = vmatpush1.msra.mxu0 %v59
    %83 = vmatprep.subr.mxu0 %v58
    %84 = vmatpush1.msra.mxu0 %v57
    %85 = vmatprep.subr.mxu0 %v56
    %86 = vmatpush1.msra.mxu0 %v55
    %87 = vmatprep.subr.mxu0 %v54
    %88 = vmatpush1.msra.mxu0 %v53
    %89 = vmatprep.subr.mxu0 %v52
    %90 = vmatpush1.msra.mxu0 %v51
    %91 = vmatprep.subr.mxu0 %v50
    %92 = vmatpush1.msra.mxu0 %v49
    %93 = vmatprep.subr.mxu0 %v48
    %94 = vmatpush1.msra.mxu0 %v47
    %95 = vmatprep.subr.mxu0 %v46
    %96 = vmatpush1.msra.mxu0 %v45
    %97 = vmatprep.subr.mxu0 %v44
    %98 = vmatpush1.msra.mxu0 %v43
    %99 = vmatprep.subr.mxu0 %v42
    %100 = vmatpush1.msra.mxu0 %v41
    %101 = vmatprep.subr.mxu0 %v40
    %102 = vmatpush1.msra.mxu0 %v39
    %103 = vmatprep.subr.mxu0 0.0
    %104 = vmatpush2.msra.mxu0 0.0
    %105 = vmatprep.subr.mxu0 0.0
    %106 = vmatpush2.msra.mxu0 0.0
    %107 = vmatprep.subr.mxu0 0.0
    %108 = vmatpush2.msra.mxu0 0.0
    %109 = vmatprep.subr.mxu0 0.0
    %110 = vmatpush2.msra.mxu0 0.0
    %111 = vmatprep.subr.mxu0 0.0
    %112 = vmatpush2.msra.mxu0 0.0
    %113 = vmatprep.subr.mxu0 0.0
    %114 = vmatpush2.msra.mxu0 0.0
    %115 = vmatprep.subr.mxu0 0.0
    %116 = vmatpush2.msra.mxu0 0.0
    %117 = vmatprep.subr.mxu0 0.0
    %118 = vmatpush2.msra.mxu0 0.0
    %119 = vmatprep.subr.mxu0 0.0
    %120 = vmatpush2.msra.mxu0 0.0
    %121 = vmatprep.subr.mxu0 0.0
    %122 = vmatpush2.msra.mxu0 0.0
    %123 = vmatprep.subr.mxu0 0.0
    %124 = vmatpush2.msra.mxu0 0.0
    %125 = vmatprep.subr.mxu0 0.0
    %126 = vmatpush2.msra.mxu0 0.0
    %127 = vmatprep.subr.mxu0 0.0
    %128 = vmatpush2.msra.mxu0 0.0
    %129 = vmatprep.subr.mxu0 0.0
    %130 = vmatpush2.msra.mxu0 0.0
    %131 = vmatprep.subr.mxu0 0.0
    %132 = vmatpush2.msra.mxu0 0.0
    %133 = vmatprep.subr.mxu0 0.0
    %134 = vmatpush2.msra.mxu0 0.0
    %135 = vmatprep.mubr.f32.mxu0 0.0
    %136 = vmatmul.mubr.f32.gmra.mxu0 %v38
    %v137 = vpop.f32.mrf.mxu0
    %v138 = vadd.f32 0.0, %v137
    %v139 = vpop.f32.mrf.mxu0
    %v140 = vadd.f32 0.0, %v139
    %141 = vdwg.mxu0
    %v142 = vmax.f32 %v138, %v140
    %v143 = vld [vmem:[#allocation5 + $0x100] ss:$0 sm:$0xff]
    %v144 = vadd.f32 %v142, %v143
    %v145 = vmax.f32 %v144, 0.0
    %vm146 = vcmask 257024
    %v147 = vsel %vm146, %v145, 0.0
    %v148 = vrot.slane %v147, 4
    %v149 = vadd.f32 %v147, %v148
    %v150 = vrot.slane %v149, 2
    %v151 = vadd.f32 %v149, %v150
    %v152 = vrot.slane %v151, 1
    %v153 = vadd.f32 %v151, %v152
    %v154 = vmul.f32 %v145, %v145
    %v155 = vsel %vm146, %v154, 0.0
    %v156 = vrot.slane %v155, 4
    %v157 = vadd.f32 %v155, %v156
    %v158 = vrot.slane %v157, 2
    %v159 = vadd.f32 %v157, %v158
    %v160 = vrot.slane %v159, 1
    %v161 = vadd.f32 %v159, %v160
    %vm162 = vcmask 1040384
    %v163 = vsel %vm162, %v153, %v161
    %v164 = vld [vmem:[#allocation5 + $0x110] sm:$0xff]
    %v165 = vld [vmem:[#allocation5 + $0x120] sm:$0xff]
    %v166 = vld [vmem:[#allocation5 + $0x130] sm:$0xff]
    %v167 = vld [vmem:[#allocation5 + $0x140] sm:$0xff]
    %vm168 = vcmask 261120
    %v170 = vsel %vm168, %v163, 0
    %172 = vmatprep.subr.mxu0 0.0
    %173 = vmatpush1.msra.mxu0 0.0
    %174 = vmatprep.subr.mxu0 0.0
    %175 = vmatpush1.msra.mxu0 0.0
    %176 = vmatprep.subr.mxu0 0.0
    %177 = vmatpush1.msra.mxu0 0.0
    %178 = vmatprep.subr.mxu0 0.0
    %179 = vmatpush1.msra.mxu0 0.0
    %180 = vmatprep.subr.mxu0 0.0
    %181 = vmatpush1.msra.mxu0 0.0
    %182 = vmatprep.subr.mxu0 0.0
    %183 = vmatpush1.msra.mxu0 0.0
    %184 = vmatprep.subr.mxu0 0.0
    %185 = vmatpush1.msra.mxu0 0.0
    %186 = vmatprep.subr.mxu0 0.0
    %187 = vmatpush1.msra.mxu0 0.0
    %188 = vmatprep.subr.mxu0 0.0
    %189 = vmatpush1.msra.mxu0 0.0
    %190 = vmatprep.subr.mxu0 0.0
    %191 = vmatpush1.msra.mxu0 0.0
    %192 = vmatprep.subr.mxu0 0.0
    %193 = vmatpush1.msra.mxu0 0.0
    %194 = vmatprep.subr.mxu0 0.0
    %195 = vmatpush1.msra.mxu0 0.0
    %196 = vmatprep.subr.mxu0 0.0
    %197 = vmatpush1.msra.mxu0 %v167
    %198 = vmatprep.subr.mxu0 0.0
    %199 = vmatpush1.msra.mxu0 %v166
    %200 = vmatprep.subr.mxu0 0.0
    %201 = vmatpush1.msra.mxu0 %v165
    %202 = vmatprep.subr.mxu0 0.0
    %203 = vmatpush1.msra.mxu0 %v164
    %204 = vmatprep.subr.mxu0 0.0
    %205 = vmatpush2.msra.mxu0 0.0
    %206 = vmatprep.subr.mxu0 0.0
    %207 = vmatpush2.msra.mxu0 0.0
    %208 = vmatprep.subr.mxu0 0.0
    %209 = vmatpush2.msra.mxu0 0.0
    %210 = vmatprep.subr.mxu0 0.0
    %211 = vmatpush2.msra.mxu0 0.0
    %212 = vmatprep.subr.mxu0 0.0
    %213 = vmatpush2.msra.mxu0 0.0
    %214 = vmatprep.subr.mxu0 0.0
    %215 = vmatpush2.msra.mxu0 0.0
    %216 = vmatprep.subr.mxu0 0.0
    %217 = vmatpush2.msra.mxu0 0.0
    %218 = vmatprep.subr.mxu0 0.0
    %219 = vmatpush2.msra.mxu0 0.0
    %220 = vmatprep.subr.mxu0 0.0
    %221 = vmatpush2.msra.mxu0 0.0
    %222 = vmatprep.subr.mxu0 0.0
    %223 = vmatpush2.msra.mxu0 0.0
    %224 = vmatprep.subr.mxu0 0.0
    %225 = vmatpush2.msra.mxu0 0.0
    %226 = vmatprep.subr.mxu0 0.0
    %227 = vmatpush2.msra.mxu0 0.0
    %228 = vmatprep.subr.mxu0 0.0
    %229 = vmatpush2.msra.mxu0 0.0
    %230 = vmatprep.subr.mxu0 0.0
    %231 = vmatpush2.msra.mxu0 0.0
    %232 = vmatprep.subr.mxu0 0.0
    %233 = vmatpush2.msra.mxu0 0.0
    %234 = vmatprep.subr.mxu0 0.0
    %235 = vmatpush2.msra.mxu0 0.0
    %236 = vmatprep.mubr.f32.mxu0 0.0
    %237 = vmatmul.mubr.f32.gmra.mxu0 %v170
    %v238 = vpop.f32.mrf.mxu0
    %v239 = vadd.f32 0.0, %v238
    %v240 = vpop.f32.mrf.mxu0
    %241 = vdwg.mxu0
    %v242 = vmul.f32 %v239, 0.03125
    %v243 = vmul.f32 %v242, %v242
    %v245 = vrot.slane %v243, 7
    %v247 = vsub.f32 %v242, %v245
    %v248 = vld [vmem:[#allocation5 + $0x160] sm:$0x3]
    %v249 = vadd.f32 %v247, 1e-05
    %v250 = vrsqrt.pop %v249
    %v252 = vrot.slane %v250, 1
    %v254 = vmul.f32 %v248, %v252
    %v255 = vmul.f32 %v242, %v254
    %v257 = vrot.slane %v255, 7
    %v259 = vsub.f32 %v248, %v257
    %v260 = vsel %vm162, %v254, %v259
    %v261 = vld [vmem:[#allocation5 + $0x150] sm:$0xf]
    %vm262 = vcmask 31744
    %v264 = vsel %vm262, %v260, 0
    %vm266 = vcmask 1043456
    %v268 = vsel %vm266, %v261, 0
    %270 = vmatprep.subr.mxu0 0.0
    %271 = vmatpush1.msra.mxu0 0.0
    %272 = vmatprep.subr.mxu0 0.0
    %273 = vmatpush1.msra.mxu0 0.0
    %274 = vmatprep.subr.mxu0 0.0
    %275 = vmatpush1.msra.mxu0 0.0
    %276 = vmatprep.subr.mxu0 0.0
    %277 = vmatpush1.msra.mxu0 0.0
    %278 = vmatprep.subr.mxu0 0.0
    %279 = vmatpush1.msra.mxu0 0.0
    %280 = vmatprep.subr.mxu0 0.0
    %281 = vmatpush1.msra.mxu0 0.0
    %282 = vmatprep.subr.mxu0 0.0
    %283 = vmatpush1.msra.mxu0 0.0
    %284 = vmatprep.subr.mxu0 0.0
    %285 = vmatpush1.msra.mxu0 0.0
    %286 = vmatprep.subr.mxu0 0.0
    %287 = vmatpush1.msra.mxu0 0.0
    %288 = vmatprep.subr.mxu0 0.0
    %289 = vmatpush1.msra.mxu0 0.0
    %290 = vmatprep.subr.mxu0 0.0
    %291 = vmatpush1.msra.mxu0 0.0
    %292 = vmatprep.subr.mxu0 0.0
    %293 = vmatpush1.msra.mxu0 0.0
    %294 = vmatprep.subr.mxu0 0.0
    %295 = vmatpush1.msra.mxu0 0.0
    %296 = vmatprep.subr.mxu0 0.0
    %297 = vmatpush1.msra.mxu0 0.0
    %298 = vmatprep.subr.mxu0 0.0
    %299 = vmatpush1.msra.mxu0 0.0
    %300 = vmatprep.subr.mxu0 0.0
    %301 = vmatpush1.msra.mxu0 %v268
    %302 = vmatprep.subr.mxu0 0.0
    %303 = vmatpush2.msra.mxu0 0.0
    %304 = vmatprep.subr.mxu0 0.0
    %305 = vmatpush2.msra.mxu0 0.0
    %306 = vmatprep.subr.mxu0 0.0
    %307 = vmatpush2.msra.mxu0 0.0
    %308 = vmatprep.subr.mxu0 0.0
    %309 = vmatpush2.msra.mxu0 0.0
    %310 = vmatprep.subr.mxu0 0.0
    %311 = vmatpush2.msra.mxu0 0.0
    %312 = vmatprep.subr.mxu0 0.0
    %313 = vmatpush2.msra.mxu0 0.0
    %314 = vmatprep.subr.mxu0 0.0
    %315 = vmatpush2.msra.mxu0 0.0
    %316 = vmatprep.subr.mxu0 0.0
    %317 = vmatpush2.msra.mxu0 0.0
    %318 = vmatprep.subr.mxu0 0.0
    %319 = vmatpush2.msra.mxu0 0.0
    %320 = vmatprep.subr.mxu0 0.0
    %321 = vmatpush2.msra.mxu0 0.0
    %322 = vmatprep.subr.mxu0 0.0
    %323 = vmatpush2.msra.mxu0 0.0
    %324 = vmatprep.subr.mxu0 0.0
    %325 = vmatpush2.msra.mxu0 0.0
    %326 = vmatprep.subr.mxu0 0.0
    %327 = vmatpush2.msra.mxu0 0.0
    %328 = vmatprep.subr.mxu0 0.0
    %329 = vmatpush2.msra.mxu0 0.0
    %330 = vmatprep.subr.mxu0 0.0
    %331 = vmatpush2.msra.mxu0 0.0
    %332 = vmatprep.subr.mxu0 0.0
    %333 = vmatpush2.msra.mxu0 0.0
    %334 = vmatprep.mubr.f32.mxu0 0.0
    %335 = vmatmul.mubr.f32.gmra.mxu0 %v264
    %v336 = vpop.f32.mrf.mxu0
    %v337 = vadd.f32 0.0, %v336
    %v338 = vpop.f32.mrf.mxu0
    %339 = vdwg.mxu0
    %v340 = vlaneseq
    %v341 = vshrl.u32 %v340, 7
    %v342 = vsub.s32 0, %v341
    %v343 = vrot.slane %v337, %v342
    %v344 = vmul.f32 %v145, %v343
    %v345 = vlaneseq
    %v346 = vshrl.u32 %v345, 7
    %v347 = vsub.s32 1, %v346
    %v348 = vrot.slane %v337, %v347
    %v349 = vadd.f32 %v344, %v348
    %v350 = vld [vmem:[#allocation5 + $0x170] sm:$0xff]
    %v351 = vld [vmem:[#allocation5 + $0x178] sm:$0xff]
    %v352 = vld [vmem:[#allocation5 + $0x180] sm:$0xff]
    %v353 = vld [vmem:[#allocation5 + $0x188] sm:$0xff]
    %v354 = vld [vmem:[#allocation5 + $0x190] sm:$0xff]
    %v355 = vld [vmem:[#allocation5 + $0x198] sm:$0xff]
    %v356 = vld [vmem:[#allocation5 + $0x1a0] sm:$0xff]
    %v357 = vld [vmem:[#allocation5 + $0x1a8] sm:$0xff]
    %v359 = vsel %vm168, %v349, 0
    %361 = vmatprep.subr.mxu0 0.0
    %362 = vmatpush1.msra.mxu0 0.0
    %363 = vmatprep.subr.mxu0 0.0
    %364 = vmatpush1.msra.mxu0 0.0
    %365 = vmatprep.subr.mxu0 0.0
    %366 = vmatpush1.msra.mxu0 0.0
    %367 = vmatprep.subr.mxu0 0.0
    %368 = vmatpush1.msra.mxu0 0.0
    %369 = vmatprep.subr.mxu0 0.0
    %370 = vmatpush1.msra.mxu0 0.0
    %371 = vmatprep.subr.mxu0 0.0
    %372 = vmatpush1.msra.mxu0 0.0
    %373 = vmatprep.subr.mxu0 0.0
    %374 = vmatpush1.msra.mxu0 0.0
    %375 = vmatprep.subr.mxu0 0.0
    %376 = vmatpush1.msra.mxu0 0.0
    %377 = vmatprep.subr.mxu0 0.0
    %378 = vmatpush1.msra.mxu0 0.0
    %379 = vmatprep.subr.mxu0 0.0
    %380 = vmatpush1.msra.mxu0 0.0
    %381 = vmatprep.subr.mxu0 0.0
    %382 = vmatpush1.msra.mxu0 0.0
    %383 = vmatprep.subr.mxu0 0.0
    %384 = vmatpush1.msra.mxu0 0.0
    %385 = vmatprep.subr.mxu0 %v357
    %386 = vmatpush1.msra.mxu0 %v356
    %387 = vmatprep.subr.mxu0 %v355
    %388 = vmatpush1.msra.mxu0 %v354
    %389 = vmatprep.subr.mxu0 %v353
    %390 = vmatpush1.msra.mxu0 %v352
    %391 = vmatprep.subr.mxu0 %v351
    %392 = vmatpush1.msra.mxu0 %v350
    %393 = vmatprep.subr.mxu0 0.0
    %394 = vmatpush2.msra.mxu0 0.0
    %395 = vmatprep.subr.mxu0 0.0
    %396 = vmatpush2.msra.mxu0 0.0
    %397 = vmatprep.subr.mxu0 0.0
    %398 = vmatpush2.msra.mxu0 0.0
    %399 = vmatprep.subr.mxu0 0.0
    %400 = vmatpush2.msra.mxu0 0.0
    %401 = vmatprep.subr.mxu0 0.0
    %402 = vmatpush2.msra.mxu0 0.0
    %403 = vmatprep.subr.mxu0 0.0
    %404 = vmatpush2.msra.mxu0 0.0
    %405 = vmatprep.subr.mxu0 0.0
    %406 = vmatpush2.msra.mxu0 0.0
    %407 = vmatprep.subr.mxu0 0.0
    %408 = vmatpush2.msra.mxu0 0.0
    %409 = vmatprep.subr.mxu0 0.0
    %410 = vmatpush2.msra.mxu0 0.0
    %411 = vmatprep.subr.mxu0 0.0
    %412 = vmatpush2.msra.mxu0 0.0
    %413 = vmatprep.subr.mxu0 0.0
    %414 = vmatpush2.msra.mxu0 0.0
    %415 = vmatprep.subr.mxu0 0.0
    %416 = vmatpush2.msra.mxu0 0.0
    %417 = vmatprep.subr.mxu0 0.0
    %418 = vmatpush2.msra.mxu0 0.0
    %419 = vmatprep.subr.mxu0 0.0
    %420 = vmatpush2.msra.mxu0 0.0
    %421 = vmatprep.subr.mxu0 0.0
    %422 = vmatpush2.msra.mxu0 0.0
    %423 = vmatprep.subr.mxu0 0.0
    %424 = vmatpush2.msra.mxu0 0.0
    %425 = vmatprep.mubr.f32.mxu0 0.0
    %426 = vmatmul.mubr.f32.gmra.mxu0 %v359
    %v427 = vpop.f32.mrf.mxu0
    %v428 = vadd.f32 0.0, %v427
    %v429 = vpop.f32.mrf.mxu0
    %v430 = vadd.f32 0.0, %v429
    %431 = vdwg.mxu0
    %v432 = vmax.f32 %v428, %v430
    %v433 = vld [vmem:[#allocation5 + $0x1b0] ss:$0 sm:$0xff]
    %v434 = vadd.f32 %v432, %v433
    %v435 = vmax.f32 %v434, 0.0
    %vm436 = vcmask 60416
    %v437 = vsel %vm436, %v435, 0.0
    %v438 = vrot.slane %v437, 4
    %v439 = vadd.f32 %v437, %v438
    %v440 = vrot.slane %v439, 2
    %v441 = vadd.f32 %v439, %v440
    %v442 = vrot.slane %v441, 1
    %v443 = vadd.f32 %v441, %v442
    %v444 = vmul.f32 %v435, %v435
    %v445 = vsel %vm436, %v444, 0.0
    %v446 = vrot.slane %v445, 4
    %v447 = vadd.f32 %v445, %v446
    %v448 = vrot.slane %v447, 2
    %v449 = vadd.f32 %v447, %v448
    %v450 = vrot.slane %v449, 1
    %v451 = vadd.f32 %v449, %v450
    %v452 = vsel %vm162, %v443, %v451
    %v453 = vmul.f32 %v452, 0.25
    %v454 = vmul.f32 %v453, %v453
    %v456 = vrot.slane %v454, 7
    %v458 = vsub.f32 %v453, %v456
    %v459 = vld [vmem:[#allocation5 + $0x1c0] sm:$0x3]
    %v460 = vadd.f32 %v458, 1e-05
    %v461 = vrsqrt.pop %v460
    %v463 = vrot.slane %v461, 1
    %v465 = vmul.f32 %v459, %v463
    %v466 = vmul.f32 %v453, %v465
    %v468 = vrot.slane %v466, 7
    %v470 = vsub.f32 %v459, %v468
    %v471 = vlaneseq
    %v472 = vshrl.u32 %v471, 7
    %v473 = vsub.s32 0, %v472
    %v474 = vrot.slane %v465, %v473
    %v475 = vmul.f32 %v435, %v474
    %v476 = vlaneseq
    %v477 = vshrl.u32 %v476, 7
    %v478 = vsub.s32 1, %v477
    %v479 = vrot.slane %v470, %v478
    %v480 = vadd.f32 %v475, %v479
    %v481 = vld [vmem:[#allocation5 + $0x1d0] sm:$0xff]
    %v482 = vld [vmem:[#allocation5 + $0x1e0] ss:$0 sm:$0xff]
    %vm483 = vcmask 64512
    %v485 = vsel %vm483, %v480, 0
    %487 = vmatprep.subr.mxu0 0.0
    %488 = vmatpush1.msra.mxu0 0.0
    %489 = vmatprep.subr.mxu0 0.0
    %490 = vmatpush1.msra.mxu0 0.0
    %491 = vmatprep.subr.mxu0 0.0
    %492 = vmatpush1.msra.mxu0 0.0
    %493 = vmatprep.subr.mxu0 0.0
    %494 = vmatpush1.msra.mxu0 0.0
    %495 = vmatprep.subr.mxu0 0.0
    %496 = vmatpush1.msra.mxu0 0.0
    %497 = vmatprep.subr.mxu0 0.0
    %498 = vmatpush1.msra.mxu0 0.0
    %499 = vmatprep.subr.mxu0 0.0
    %500 = vmatpush1.msra.mxu0 0.0
    %501 = vmatprep.subr.mxu0 0.0
    %502 = vmatpush1.msra.mxu0 0.0
    %503 = vmatprep.subr.mxu0 0.0
    %504 = vmatpush1.msra.mxu0 0.0
    %505 = vmatprep.subr.mxu0 0.0
    %506 = vmatpush1.msra.mxu0 0.0
    %507 = vmatprep.subr.mxu0 0.0
    %508 = vmatpush1.msra.mxu0 0.0
    %509 = vmatprep.subr.mxu0 0.0
    %510 = vmatpush1.msra.mxu0 0.0
    %511 = vmatprep.subr.mxu0 0.0
    %512 = vmatpush1.msra.mxu0 0.0
    %513 = vmatprep.subr.mxu0 0.0
    %514 = vmatpush1.msra.mxu0 0.0
    %515 = vmatprep.subr.mxu0 0.0
    %516 = vmatpush1.msra.mxu0 0.0
    %517 = vmatprep.subr.mxu0 0.0
    %518 = vmatpush1.msra.mxu0 %v481
    %519 = vmatprep.subr.mxu0 0.0
    %520 = vmatpush2.msra.mxu0 0.0
    %521 = vmatprep.subr.mxu0 0.0
    %522 = vmatpush2.msra.mxu0 0.0
    %523 = vmatprep.subr.mxu0 0.0
    %524 = vmatpush2.msra.mxu0 0.0
    %525 = vmatprep.subr.mxu0 0.0
    %526 = vmatpush2.msra.mxu0 0.0
    %527 = vmatprep.subr.mxu0 0.0
    %528 = vmatpush2.msra.mxu0 0.0
    %529 = vmatprep.subr.mxu0 0.0
    %530 = vmatpush2.msra.mxu0 0.0
    %531 = vmatprep.subr.mxu0 0.0
    %532 = vmatpush2.msra.mxu0 0.0
    %533 = vmatprep.subr.mxu0 0.0
    %534 = vmatpush2.msra.mxu0 0.0
    %535 = vmatprep.subr.mxu0 0.0
    %536 = vmatpush2.msra.mxu0 0.0
    %537 = vmatprep.subr.mxu0 0.0
    %538 = vmatpush2.msra.mxu0 0.0
    %539 = vmatprep.subr.mxu0 0.0
    %540 = vmatpush2.msra.mxu0 0.0
    %541 = vmatprep.subr.mxu0 0.0
    %542 = vmatpush2.msra.mxu0 0.0
    %543 = vmatprep.subr.mxu0 0.0
    %544 = vmatpush2.msra.mxu0 0.0
    %545 = vmatprep.subr.mxu0 0.0
    %546 = vmatpush2.msra.mxu0 0.0
    %547 = vmatprep.subr.mxu0 0.0
    %548 = vmatpush2.msra.mxu0 0.0
    %549 = vmatprep.subr.mxu0 0.0
    %550 = vmatpush2.msra.mxu0 0.0
    %551 = vmatprep.mubr.f32.mxu0 0.0
    %552 = vmatmul.mubr.f32.gmra.mxu0 %v485
    %v553 = vpop.f32.mrf.mxu0
    %v554 = vadd.f32 %v482, %v553
    %v555 = vpop.f32.mrf.mxu0
    %556 = vdwg.mxu0
    %v557 = vmax.f32 %v554, 0.0
    %v558 = vld [vmem:[#allocation5 + $0x1f0] sm:$0xff]
    %v559 = vld [vmem:[#allocation5 + $0x200] sm:$0xff]
    %v560 = vld [vmem:[#allocation5 + $0x210] sm:$0xff]
    %v561 = vld [vmem:[#allocation5 + $0x220] sm:$0xff]
    %v562 = vld [vmem:[#allocation5 + $0x230] ss:$0 sm:$0xff]
    %v564 = vsel %vm168, %v557, 0
    %566 = vmatprep.subr.mxu0 0.0
    %567 = vmatpush1.msra.mxu0 0.0
    %568 = vmatprep.subr.mxu0 0.0
    %569 = vmatpush1.msra.mxu0 0.0
    %570 = vmatprep.subr.mxu0 0.0
    %571 = vmatpush1.msra.mxu0 0.0
    %572 = vmatprep.subr.mxu0 0.0
    %573 = vmatpush1.msra.mxu0 0.0
    %574 = vmatprep.subr.mxu0 0.0
    %575 = vmatpush1.msra.mxu0 0.0
    %576 = vmatprep.subr.mxu0 0.0
    %577 = vmatpush1.msra.mxu0 0.0
    %578 = vmatprep.subr.mxu0 0.0
    %579 = vmatpush1.msra.mxu0 0.0
    %580 = vmatprep.subr.mxu0 0.0
    %581 = vmatpush1.msra.mxu0 0.0
    %582 = vmatprep.subr.mxu0 0.0
    %583 = vmatpush1.msra.mxu0 0.0
    %584 = vmatprep.subr.mxu0 0.0
    %585 = vmatpush1.msra.mxu0 0.0
    %586 = vmatprep.subr.mxu0 0.0
    %587 = vmatpush1.msra.mxu0 0.0
    %588 = vmatprep.subr.mxu0 0.0
    %589 = vmatpush1.msra.mxu0 0.0
    %590 = vmatprep.subr.mxu0 0.0
    %591 = vmatpush1.msra.mxu0 %v561
    %592 = vmatprep.subr.mxu0 0.0
    %593 = vmatpush1.msra.mxu0 %v560
    %594 = vmatprep.subr.mxu0 0.0
    %595 = vmatpush1.msra.mxu0 %v559
    %596 = vmatprep.subr.mxu0 0.0
    %597 = vmatpush1.msra.mxu0 %v558
    %598 = vmatprep.subr.mxu0 0.0
    %599 = vmatpush2.msra.mxu0 0.0
    %600 = vmatprep.subr.mxu0 0.0
    %601 = vmatpush2.msra.mxu0 0.0
    %602 = vmatprep.subr.mxu0 0.0
    %603 = vmatpush2.msra.mxu0 0.0
    %604 = vmatprep.subr.mxu0 0.0
    %605 = vmatpush2.msra.mxu0 0.0
    %606 = vmatprep.subr.mxu0 0.0
    %607 = vmatpush2.msra.mxu0 0.0
    %608 = vmatprep.subr.mxu0 0.0
    %609 = vmatpush2.msra.mxu0 0.0
    %610 = vmatprep.subr.mxu0 0.0
    %611 = vmatpush2.msra.mxu0 0.0
    %612 = vmatprep.subr.mxu0 0.0
    %613 = vmatpush2.msra.mxu0 0.0
    %614 = vmatprep.subr.mxu0 0.0
    %615 = vmatpush2.msra.mxu0 0.0
    %616 = vmatprep.subr.mxu0 0.0
    %617 = vmatpush2.msra.mxu0 0.0
    %618 = vmatprep.subr.mxu0 0.0
    %619 = vmatpush2.msra.mxu0 0.0
    %620 = vmatprep.subr.mxu0 0.0
    %621 = vmatpush2.msra.mxu0 0.0
    %622 = vmatprep.subr.mxu0 0.0
    %623 = vmatpush2.msra.mxu0 0.0
    %624 = vmatprep.subr.mxu0 0.0
    %625 = vmatpush2.msra.mxu0 0.0
    %626 = vmatprep.subr.mxu0 0.0
    %627 = vmatpush2.msra.mxu0 0.0
    %628 = vmatprep.subr.mxu0 0.0
    %629 = vmatpush2.msra.mxu0 0.0
    %630 = vmatprep.mubr.f32.mxu0 0.0
    %631 = vmatmul.mubr.f32.gmra.mxu0 %v564
    %v632 = vpop.f32.mrf.mxu0
    %v633 = vadd.f32 %v562, %v632
    %v634 = vpop.f32.mrf.mxu0
    %635 = vdwg.mxu0
    %v636 = vmax.f32 %v633, 0.0
    %v637 = vld [vmem:[#allocation5 + $0x240] sm:$0xff]
    %v638 = vld [vmem:[#allocation5 + $0x250] sm:$0xff]
    %v639 = vld [vmem:[#allocation5 + $0x260] sm:$0xff]
    %v640 = vld [vmem:[#allocation5 + $0x270] sm:$0xff]
    %v641 = vld [vmem:[#allocation5 + $0x280] ss:$0 sm:$0xff]
    %v643 = vsel %vm168, %v636, 0
    %645 = vmatprep.subr.mxu0 0.0
    %646 = vmatpush1.msra.mxu0 0.0
    %647 = vmatprep.subr.mxu0 0.0
    %648 = vmatpush1.msra.mxu0 0.0
    %649 = vmatprep.subr.mxu0 0.0
    %650 = vmatpush1.msra.mxu0 0.0
    %651 = vmatprep.subr.mxu0 0.0
    %652 = vmatpush1.msra.mxu0 0.0
    %653 = vmatprep.subr.mxu0 0.0
    %654 = vmatpush1.msra.mxu0 0.0
    %655 = vmatprep.subr.mxu0 0.0
    %656 = vmatpush1.msra.mxu0 0.0
    %657 = vmatprep.subr.mxu0 0.0
    %658 = vmatpush1.msra.mxu0 0.0
    %659 = vmatprep.subr.mxu0 0.0
    %660 = vmatpush1.msra.mxu0 0.0
    %661 = vmatprep.subr.mxu0 0.0
    %662 = vmatpush1.msra.mxu0 0.0
    %663 = vmatprep.subr.mxu0 0.0
    %664 = vmatpush1.msra.mxu0 0.0
    %665 = vmatprep.subr.mxu0 0.0
    %666 = vmatpush1.msra.mxu0 0.0
    %667 = vmatprep.subr.mxu0 0.0
    %668 = vmatpush1.msra.mxu0 0.0
    %669 = vmatprep.subr.mxu0 0.0
    %670 = vmatpush1.msra.mxu0 %v640
    %671 = vmatprep.subr.mxu0 0.0
    %672 = vmatpush1.msra.mxu0 %v639
    %673 = vmatprep.subr.mxu0 0.0
    %674 = vmatpush1.msra.mxu0 %v638
    %675 = vmatprep.subr.mxu0 0.0
    %676 = vmatpush1.msra.mxu0 %v637
    %677 = vmatprep.subr.mxu0 0.0
    %678 = vmatpush2.msra.mxu0 0.0
    %679 = vmatprep.subr.mxu0 0.0
    %680 = vmatpush2.msra.mxu0 0.0
    %681 = vmatprep.subr.mxu0 0.0
    %682 = vmatpush2.msra.mxu0 0.0
    %683 = vmatprep.subr.mxu0 0.0
    %684 = vmatpush2.msra.mxu0 0.0
    %685 = vmatprep.subr.mxu0 0.0
    %686 = vmatpush2.msra.mxu0 0.0
    %687 = vmatprep.subr.mxu0 0.0
    %688 = vmatpush2.msra.mxu0 0.0
    %689 = vmatprep.subr.mxu0 0.0
    %690 = vmatpush2.msra.mxu0 0.0
    %691 = vmatprep.subr.mxu0 0.0
    %692 = vmatpush2.msra.mxu0 0.0
    %693 = vmatprep.subr.mxu0 0.0
    %694 = vmatpush2.msra.mxu0 0.0
    %695 = vmatprep.subr.mxu0 0.0
    %696 = vmatpush2.msra.mxu0 0.0
    %697 = vmatprep.subr.mxu0 0.0
    %698 = vmatpush2.msra.mxu0 0.0
    %699 = vmatprep.subr.mxu0 0.0
    %700 = vmatpush2.msra.mxu0 0.0
    %701 = vmatprep.subr.mxu0 0.0
    %702 = vmatpush2.msra.mxu0 0.0
    %703 = vmatprep.subr.mxu0 0.0
    %704 = vmatpush2.msra.mxu0 0.0
    %705 = vmatprep.subr.mxu0 0.0
    %706 = vmatpush2.msra.mxu0 0.0
    %707 = vmatprep.subr.mxu0 0.0
    %708 = vmatpush2.msra.mxu0 0.0
    %709 = vmatprep.mubr.f32.mxu0 0.0
    %710 = vmatmul.mubr.f32.gmra.mxu0 %v643
    %v711 = vpop.f32.mrf.mxu0
    %v712 = vadd.f32 %v641, %v711
    %v713 = vpop.f32.mrf.mxu0
    %714 = vdwg.mxu0
    %vm715 = vcmask 35840
    %716 = vst.msk [vmem:[#allocation7] sm:$0xf] %vm715, %v712
    // Predicated region
    $region18: #{tpu_custom_call.1} parent=1 // pred_check
      _
    $region19: #{tpu_custom_call.1} parent=1 // pred_check_branch
      %718 = sbr.rel (0) target = $region21
    $region20: #{tpu_custom_call.1} parent=1 // pred_region
      %s720 = ssub.s32 64, 64
      %721 = vsyncadd [#allocation4], %s720
      %s723 = sshll.u32 [#allocation7], 4
      %s724 = int_to_ptr.vmem [resolvable:$true] %s723
      %726 = dma.vmem_to_hbm [thread:$0]  %s724, 64, %s2, [#allocation4]
    $region21: #{tpu_custom_call.1} parent=1 // pred_fallthru
      _
    // Predicated region
    $region22: #{tpu_custom_call.1} parent=1 // pred_check
      _
    $region23: #{tpu_custom_call.1} parent=1 // pred_check_branch
      %728 = sbr.rel (0) target = $region25
    $region24: #{tpu_custom_call.1} parent=1 // pred_region
      %729 = dma.done [#allocation4], 64
    $region25: #{tpu_custom_call.1} parent=1 // pred_fallthru
      _
    %730 = vsyncpa [#allocation3], 1
    %731 = vsyncpa [#allocation6], 1
    %732 = vsyncpa [#allocation4], 1

</llo_original>
